<compile_context>
chip_gen: v6e
topology: v6e:2x2x1
jax: 0.10.0
libtpu: 0.0.40
codegen_flags: <defaults>
</compile_context>

<pallas_src>
import functools

import jax
import jax.numpy as jnp
from jax import lax
from jax.experimental import pallas as pl
from jax.experimental.pallas import tpu as pltpu


def _round_up(n, m):
    return (n + m - 1) // m * m


def _mlp_kernel(x_ref, w01_ref, b01_ref, w2_ref, o_ref):
    """Fused MLP forward for one batch tile, fully resident in VMEM.

    x_ref   : (tb, I)     streaming batch tile
    w01_ref : (H1a, I)    fused Linear0*Linear1 weight (resident)
    b01_ref : (H1a, 1)    fused bias column (incl. the constant unit)
    w2_ref  : (H1a, 1)    output weights column (incl. folded b2)
    o_ref   : (1, 1, tb)  lane-dense output row for this tile
    """
    x = x_ref[...]                                            # (tb, I) f32
    # hidden^T: contract the feature axes ("a @ b.T" pattern) so the batch
    # dimension lands on the lane axis of the MXU result.
    hT = lax.dot_general(
        w01_ref[...], x,
        dimension_numbers=(((1,), (1,)), ((), ())),
        preferred_element_type=jnp.float32,
    )                                                         # (H1a, tb)
    hT = jnp.maximum(hT + b01_ref[...], 0.0)                  # bias + ReLU
    # Dropout(p): identity in eval mode (predict() calls .eval()).
    # TODO(synk): training-mode dropout (pltpu.prng_*) not implemented.
    # Final Linear(H1, 1): VPU broadcast-multiply + sublane reduce; the output
    # bias b2 rides the augmented constant hidden unit, so no epilogue add.
    out = jnp.sum(hT * w2_ref[...], axis=0, keepdims=True)    # (1, tb), lane-dense
    o_ref[...] = out[None].astype(o_ref.dtype)                # (1, 1, tb)


@functools.partial(jax.jit, static_argnames=("tb",))
def mlp_forward(x, params, *, tb=2048):
    """x: (B, I) float32. params: ((w0,b0),(w1,b1),(w2,b2)) in PyTorch nn.Linear layout."""
    (w0, b0), (w1, b1), (w2, b2) = params
    B, I = x.shape
    H1 = w1.shape[0]
    hi = lax.Precision.HIGHEST

    # ---- glue: fuse Linear0 + Linear1 (exact: no activation between them) ----
    #   y = (x @ w0.T + b0) @ w1.T + b1 = x @ (w1 @ w0).T + (w1 @ b0 + b1)
    w01 = jnp.matmul(w1, w0, precision=hi)                    # (H1, I)
    b01 = jnp.matmul(w1, b0, precision=hi) + b1               # (H1,)

    # ---- fold scalar output bias b2 via one constant hidden unit; zero-pad
    #      the hidden dim to a multiple of 8 (pad rows contribute exactly 0). ----
    H1a = _round_up(H1 + 1, 8)
    w01a = jnp.zeros((H1a, I), jnp.float32).at[:H1].set(w01)
    b01a = jnp.zeros((H1a, 1), jnp.float32).at[:H1, 0].set(b01).at[H1, 0].set(1.0)
    w2a = jnp.zeros((H1a, 1), jnp.float32).at[:H1, 0].set(w2[0]).at[H1, 0].set(b2[0])

    # ---- batch tiling: lane-dense tiles; pad the batch instead of asserting ----
    # Keep the double-buffered x tile well under v5e's 16 MiB default scoped
    # VMEM (also far below v7x's 64 MiB/TC physical VMEM).
    vmem_budget = 8 * 1024 * 1024
    max_tb = max(128, (vmem_budget // (2 * I * 4)) // 128 * 128)
    tb = min(max(tb, 128), _round_up(B, 128), max_tb)
    tb = _round_up(tb, 128)                                   # multiple of 128 (lane-dense)
    Bp = _round_up(B, tb)
    nb = Bp // tb
    xp = jnp.pad(x, ((0, Bp - B), (0, 0))) if Bp != B else x

    full = lambda shape: pl.BlockSpec(shape, lambda i: (0,) * len(shape))
    grid_spec = pltpu.PrefetchScalarGridSpec(
        num_scalar_prefetch=0,
        grid=(nb,),                                           # batch axis -> megacore on v7x
        in_specs=[
            pl.BlockSpec((tb, I), lambda i: (i, 0)),          # x: the only streaming operand
            full((H1a, I)),                                   # constant block index ->
            full((H1a, 1)),                                   #   weights stay resident
            full((H1a, 1)),
        ],
        out_specs=pl.BlockSpec((1, 1, tb), lambda i: (i, 0, 0)),  # lane-dense output rows
    )
    out = pl.pallas_call(
        _mlp_kernel,
        out_shape=jax.ShapeDtypeStruct((nb, 1, tb), jnp.float32),
        grid_spec=grid_spec,
        compiler_params=pltpu.CompilerParams(dimension_semantics=("parallel",)),
    )(xp, w01a, b01a, w2a)

    # (nb, 1, tb) -> (Bp, 1) is a contiguous reshape; drop the padding rows.
    return out.reshape(Bp, 1)[:B]


def init_params(key, input_size, layer_sizes):
    """Deterministic init matching nn.Linear's U(-1/sqrt(fan_in), 1/sqrt(fan_in))."""
    sizes = list(layer_sizes) + [1]
    dims = [(input_size, sizes[0])] + [(sizes[i], sizes[i + 1]) for i in range(len(sizes) - 1)]
    params = []
    for fan_in, fan_out in dims:
        key, kw, kb = jax.random.split(key, 3)
        bound = 1.0 / (fan_in ** 0.5)
        w = jax.random.uniform(kw, (fan_out, fan_in), jnp.float32, -bound, bound)
        b = jax.random.uniform(kb, (fan_out,), jnp.float32, -bound, bound)
        params.append((w, b))
    return tuple(params)


def reference_forward(x, params):
    """Pure-JAX fp32 reference of the PyTorch forward (eval mode)."""
    hi = lax.Precision.HIGHEST
    (w0, b0), (w1, b1), (w2, b2) = params
    h = jnp.matmul(x, w0.T, precision=hi) + b0     # Linear(I, H0), no activation
    h = jnp.matmul(h, w1.T, precision=hi) + b1     # Linear(H0, H1)
    h = jnp.maximum(h, 0.0)                        # ReLU (Dropout is identity in eval)
    return jnp.matmul(h, w2.T, precision=hi) + b2  # Linear(H1, 1)


if __name__ == "__main__":
    key = jax.random.PRNGKey(0)
    kx, kp = jax.random.split(key)

    input_size = 32
    layer_sizes = (32, 16)
    batch = 200  # deliberately NOT a multiple of 128: exercises the padding path

    x = jax.random.normal(kx, (batch, input_size), jnp.float32)
    params = init_params(kp, input_size, layer_sizes)

    out = jax.block_until_ready(mlp_forward(x, params))
    ref = reference_forward(x, params)

    assert out.shape == (batch, 1), out.shape
    err = float(jnp.max(jnp.abs(out - ref)))
    # Fusing Linear0/Linear1 reorders fp32 ops; tolerance covers reassociation.
    assert err < 1e-4, f"mismatch vs reference: max abs err = {err}"

    print("KERNEL_OK")
</pallas_src>

<mosaic_0001>
module attributes {stable_mosaic.version = 11 : i64} {
  func.func @_mlp_kernel(%arg0: i32, %arg1: memref<256x32xf32, #tpu.memory_space<vmem>>, %arg2: memref<24x32xf32, #tpu.memory_space<vmem>>, %arg3: memref<24x1xf32, #tpu.memory_space<vmem>>, %arg4: memref<24x1xf32, #tpu.memory_space<vmem>>, %arg5: memref<1x1x256xf32, #tpu.memory_space<vmem>>) attributes {dimension_semantics = [#tpu.dimension_semantics<parallel>], iteration_bounds = array<i64: 1>, scalar_prefetch = 0 : i64, scratch_operands = 0 : i64, tpu.core_type = #tpu.core_type<tc>, window_params = [{transform_indices = @transform_0, window_bounds = array<i64: 256, 32>}, {pipeline_mode = #tpu.pipeline_mode<synchronous>, transform_indices = @transform_1, window_bounds = array<i64: 24, 32>}, {pipeline_mode = #tpu.pipeline_mode<synchronous>, transform_indices = @transform_2, window_bounds = array<i64: 24, 1>}, {pipeline_mode = #tpu.pipeline_mode<synchronous>, transform_indices = @transform_3, window_bounds = array<i64: 24, 1>}, {transform_indices = @transform_4, window_bounds = array<i64: 1, 1, 256>}]} {
    %c0 = arith.constant 0 : index
    %c0_0 = arith.constant 0 : index
    %0 = vector.load %arg1[%c0, %c0_0] : memref<256x32xf32, #tpu.memory_space<vmem>>, vector<256x32xf32>
    %c0_1 = arith.constant 0 : index
    %c0_2 = arith.constant 0 : index
    %1 = vector.load %arg2[%c0_1, %c0_2] : memref<24x32xf32, #tpu.memory_space<vmem>>, vector<24x32xf32>
    %cst = arith.constant dense<0.000000e+00> : vector<24x256xf32>
    %2 = tpu.matmul %1, %0, %cst {dimension_numbers = #tpu.dot_dimension_numbers<[1], [1], [0], [0], [0, 0, 1, 0], [], []>} : vector<24x32xf32>, vector<256x32xf32>, vector<24x256xf32> -> vector<24x256xf32>
    %c0_3 = arith.constant 0 : index
    %c0_4 = arith.constant 0 : index
    %3 = vector.load %arg3[%c0_3, %c0_4] : memref<24x1xf32, #tpu.memory_space<vmem>>, vector<24x1xf32>
    %4 = vector.broadcast %3 : vector<24x1xf32> to vector<24x256xf32>
    %5 = arith.addf %2, %4 : vector<24x256xf32>
    %cst_5 = arith.constant 0.000000e+00 : f32
    %6 = vector.broadcast %cst_5 : f32 to vector<24x256xf32>
    %7 = arith.maximumf %5, %6 : vector<24x256xf32>
    %c0_6 = arith.constant 0 : index
    %c0_7 = arith.constant 0 : index
    %8 = vector.load %arg4[%c0_6, %c0_7] : memref<24x1xf32, #tpu.memory_space<vmem>>, vector<24x1xf32>
    %9 = vector.broadcast %8 : vector<24x1xf32> to vector<24x256xf32>
    %10 = arith.mulf %7, %9 : vector<24x256xf32>
    %cst_8 = arith.constant dense<0.000000e+00> : vector<256xf32>
    %11 = vector.multi_reduction <add>, %10, %cst_8 [0] : vector<24x256xf32> to vector<256xf32>
    %12 = vector.shape_cast %11 : vector<256xf32> to vector<1x256xf32>
    %13 = vector.shape_cast %12 : vector<1x256xf32> to vector<1x1x256xf32>
    %c0_9 = arith.constant 0 : index
    %c0_10 = arith.constant 0 : index
    %c0_11 = arith.constant 0 : index
    %14 = vector.load %arg5[%c0_9, %c0_10, %c0_11] : memref<1x1x256xf32, #tpu.memory_space<vmem>>, vector<1x1x256xf32>
    tpu.vector_store %arg5[%c0_9, %c0_10, %c0_11], %13 {strides = array<i32>} : memref<1x1x256xf32, #tpu.memory_space<vmem>>, vector<1x1x256xf32>,
    return
  }
  func.func @transform_0(%arg0: i32) -> (i32, i32) {
    %c0_i32 = arith.constant 0 : i32
    %c0_i32_0 = arith.constant 0 : i32
    return %arg0, %c0_i32 : i32, i32
  }
  func.func @transform_1(%arg0: i32) -> (i32, i32) {
    %c0_i32 = arith.constant 0 : i32
    %c0_i32_0 = arith.constant 0 : i32
    %c0_i32_1 = arith.constant 0 : i32
    return %c0_i32, %c0_i32_0 : i32, i32
  }
  func.func @transform_2(%arg0: i32) -> (i32, i32) {
    %c0_i32 = arith.constant 0 : i32
    %c0_i32_0 = arith.constant 0 : i32
    %c0_i32_1 = arith.constant 0 : i32
    return %c0_i32, %c0_i32_0 : i32, i32
  }
  func.func @transform_3(%arg0: i32) -> (i32, i32) {
    %c0_i32 = arith.constant 0 : i32
    %c0_i32_0 = arith.constant 0 : i32
    %c0_i32_1 = arith.constant 0 : i32
    return %c0_i32, %c0_i32_0 : i32, i32
  }
  func.func @transform_4(%arg0: i32) -> (i32, i32, i32) {
    %c0_i32 = arith.constant 0 : i32
    %c0_i32_0 = arith.constant 0 : i32
    %c0_i32_1 = arith.constant 0 : i32
    return %arg0, %c0_i32, %c0_i32_0 : i32, i32, i32
  }
}

</mosaic_0001>

<llo_original>
// kernel: mlp_forward.1
$region0: #{mlp_forward.1}
  #allocation0 [shape = 'u32[]', space=smem, size = 0x4, offset = 0x4, fixed_abs, tag = 'smem constant byte address 0x4 - core index']
  #allocation1 [shape = 'u32[144,128]{1,0:T(1,128)}', space=vmem, size = 0x12000, scoped, tag = 'internal scratch']
  %s0 = inlined_call_operand.vmem [shape: f32[256,32], index: 0, kind: input, shape index: {}]
  %s1 = inlined_call_operand.vmem [shape: f32[24,32], index: 1, kind: input, shape index: {}]
  %s2 = inlined_call_operand.vmem [shape: f32[24,1], index: 2, kind: input, shape index: {}]
  %s3 = inlined_call_operand.vmem [shape: f32[24,1], index: 3, kind: input, shape index: {}]
  %s4 = inlined_call_operand.vmem [shape: f32[1,1,256], index: 4, kind: output, shape index: {}]
  %s5 = sld [smem:[#allocation0]]
  $region26: #{mlp_forward.1} parent=0
    _
  %s7 = ssub.s32 1, %s5
  %s8 = scalar_select 0, %s7, %s5
  // Predicated region
  $region2: #{mlp_forward.1} parent=0 // pred_check
    _
  $region3: #{mlp_forward.1} parent=0 // pred_check_branch
    %10 = sbr.rel (0) target = $region5
  $region4: #{mlp_forward.1} parent=0 // pred_region
    _
  $region5: #{mlp_forward.1} parent=0 // pred_fallthru
    _
  // Predicated region
  $region6: #{mlp_forward.1} parent=0 // pred_check
    _
  $region7: #{mlp_forward.1} parent=0 // pred_check_branch
    %12 = sbr.rel (0) target = $region9
  $region8: #{mlp_forward.1} parent=0 // pred_region
    _
  $region9: #{mlp_forward.1} parent=0 // pred_fallthru
    _
  // Predicated region
  $region10: #{mlp_forward.1} parent=0 // pred_check
    _
  $region11: #{mlp_forward.1} parent=0 // pred_check_branch
    %14 = sbr.rel (0) target = $region13
  $region12: #{mlp_forward.1} parent=0 // pred_region
    _
  $region13: #{mlp_forward.1} parent=0 // pred_fallthru
    _
  // Predicated region
  $region14: #{mlp_forward.1} parent=0 // pred_check
    _
  $region15: #{mlp_forward.1} parent=0 // pred_check_branch
    %16 = sbr.rel (0) target = $region17
  $region16: #{mlp_forward.1} parent=0 // pred_region
    _
  $region17: #{mlp_forward.1} parent=0 // pred_fallthru
    _
  %v17 = vld [vmem:[%s0] sm:$0xff]
  %v18 = vld [vmem:[%s0 + $0x8] sm:$0xff]
  %v19 = vld [vmem:[%s0 + $0x10] sm:$0xff]
  %v20 = vld [vmem:[%s0 + $0x18] sm:$0xff]
  %v21 = vld [vmem:[%s0 + $0x20] sm:$0xff]
  %v22 = vld [vmem:[%s0 + $0x28] sm:$0xff]
  %v23 = vld [vmem:[%s0 + $0x30] sm:$0xff]
  %v24 = vld [vmem:[%s0 + $0x38] sm:$0xff]
  %v25 = vld [vmem:[%s0 + $0x40] sm:$0xff]
  %v26 = vld [vmem:[%s0 + $0x48] sm:$0xff]
  %v27 = vld [vmem:[%s0 + $0x50] sm:$0xff]
  %v28 = vld [vmem:[%s0 + $0x58] sm:$0xff]
  %v29 = vld [vmem:[%s0 + $0x60] sm:$0xff]
  %v30 = vld [vmem:[%s0 + $0x68] sm:$0xff]
  %v31 = vld [vmem:[%s0 + $0x70] sm:$0xff]
  %v32 = vld [vmem:[%s0 + $0x78] sm:$0xff]
  %v33 = vld [vmem:[%s0 + $0x80] sm:$0xff]
  %v34 = vld [vmem:[%s0 + $0x88] sm:$0xff]
  %v35 = vld [vmem:[%s0 + $0x90] sm:$0xff]
  %v36 = vld [vmem:[%s0 + $0x98] sm:$0xff]
  %v37 = vld [vmem:[%s0 + $0xa0] sm:$0xff]
  %v38 = vld [vmem:[%s0 + $0xa8] sm:$0xff]
  %v39 = vld [vmem:[%s0 + $0xb0] sm:$0xff]
  %v40 = vld [vmem:[%s0 + $0xb8] sm:$0xff]
  %v41 = vld [vmem:[%s0 + $0xc0] sm:$0xff]
  %v42 = vld [vmem:[%s0 + $0xc8] sm:$0xff]
  %v43 = vld [vmem:[%s0 + $0xd0] sm:$0xff]
  %v44 = vld [vmem:[%s0 + $0xd8] sm:$0xff]
  %v45 = vld [vmem:[%s0 + $0xe0] sm:$0xff]
  %v46 = vld [vmem:[%s0 + $0xe8] sm:$0xff]
  %v47 = vld [vmem:[%s0 + $0xf0] sm:$0xff]
  %v48 = vld [vmem:[%s0 + $0xf8] sm:$0xff]
  %v49 = vld [vmem:[%s1] sm:$0xff]
  %v50 = vld [vmem:[%s1 + $0x8] sm:$0xff]
  %v51 = vld [vmem:[%s1 + $0x10] sm:$0xff]
  %v52 = vld [vmem:[%s2] sm:$0xff]
  %v53 = vld [vmem:[%s2 + $0x8] sm:$0xff]
  %v54 = vld [vmem:[%s2 + $0x10] sm:$0xff]
  %56 = vset.pattern.permute.xlu0 0
  %57 = vperm.xlu0 %56, %v52
  %v58 = vpop.permute.xlu0 %57
  %61 = vset.pattern.permute.xlu0 0
  %62 = vperm.xlu0 %61, %v53
  %v63 = vpop.permute.xlu0 %62
  %66 = vset.pattern.permute.xlu0 0
  %67 = vperm.xlu0 %66, %v54
  %v68 = vpop.permute.xlu0 %67
  %vm70 = vcmask 261120
  %v72 = vsel %vm70, %v49, 0
  %v75 = vsel %vm70, %v50, 0
  %v78 = vsel %vm70, %v51, 0
  %v81 = vsel %vm70, %v17, 0
  %v84 = vsel %vm70, %v18, 0
  %v87 = vsel %vm70, %v19, 0
  %v90 = vsel %vm70, %v20, 0
  %v93 = vsel %vm70, %v21, 0
  %v96 = vsel %vm70, %v22, 0
  %v99 = vsel %vm70, %v23, 0
  %v102 = vsel %vm70, %v24, 0
  %v105 = vsel %vm70, %v25, 0
  %v108 = vsel %vm70, %v26, 0
  %v111 = vsel %vm70, %v27, 0
  %v114 = vsel %vm70, %v28, 0
  %v117 = vsel %vm70, %v29, 0
  %v120 = vsel %vm70, %v30, 0
  %v123 = vsel %vm70, %v31, 0
  %v126 = vsel %vm70, %v32, 0
  %v129 = vsel %vm70, %v33, 0
  %v132 = vsel %vm70, %v34, 0
  %v135 = vsel %vm70, %v35, 0
  %v138 = vsel %vm70, %v36, 0
  %v141 = vsel %vm70, %v37, 0
  %v144 = vsel %vm70, %v38, 0
  %v147 = vsel %vm70, %v39, 0
  %v150 = vsel %vm70, %v40, 0
  %v153 = vsel %vm70, %v41, 0
  %v156 = vsel %vm70, %v42, 0
  %v159 = vsel %vm70, %v43, 0
  %v162 = vsel %vm70, %v44, 0
  %v165 = vsel %vm70, %v45, 0
  %v168 = vsel %vm70, %v46, 0
  %v171 = vsel %vm70, %v47, 0
  %v174 = vsel %vm70, %v48, 0
  %176 = vmatprep.subr.mxu0 0.0
  %177 = vmatpush1.xpose.msra.mxu0 %v126
  %178 = vmatprep.subr.mxu0 0.0
  %179 = vmatpush1.xpose.msra.mxu0 %v123
  %180 = vmatprep.subr.mxu0 0.0
  %181 = vmatpush1.xpose.msra.mxu0 %v120
  %182 = vmatprep.subr.mxu0 0.0
  %183 = vmatpush1.xpose.msra.mxu0 %v117
  %184 = vmatprep.subr.mxu0 0.0
  %185 = vmatpush1.xpose.msra.mxu0 %v114
  %186 = vmatprep.subr.mxu0 0.0
  %187 = vmatpush1.xpose.msra.mxu0 %v111
  %188 = vmatprep.subr.mxu0 0.0
  %189 = vmatpush1.xpose.msra.mxu0 %v108
  %190 = vmatprep.subr.mxu0 0.0
  %191 = vmatpush1.xpose.msra.mxu0 %v105
  %192 = vmatprep.subr.mxu0 0.0
  %193 = vmatpush1.xpose.msra.mxu0 %v102
  %194 = vmatprep.subr.mxu0 0.0
  %195 = vmatpush1.xpose.msra.mxu0 %v99
  %196 = vmatprep.subr.mxu0 0.0
  %197 = vmatpush1.xpose.msra.mxu0 %v96
  %198 = vmatprep.subr.mxu0 0.0
  %199 = vmatpush1.xpose.msra.mxu0 %v93
  %200 = vmatprep.subr.mxu0 0.0
  %201 = vmatpush1.xpose.msra.mxu0 %v90
  %202 = vmatprep.subr.mxu0 0.0
  %203 = vmatpush1.xpose.msra.mxu0 %v87
  %204 = vmatprep.subr.mxu0 0.0
  %205 = vmatpush1.xpose.msra.mxu0 %v84
  %206 = vmatprep.subr.mxu0 0.0
  %207 = vmatpush1.xpose.msra.mxu0 %v81
  %208 = vmatprep.subr.mxu0 0.0
  %209 = vmatpush2.xpose.msra.mxu0 %v174
  %210 = vmatprep.subr.mxu0 0.0
  %211 = vmatpush2.xpose.msra.mxu0 %v171
  %212 = vmatprep.subr.mxu0 0.0
  %213 = vmatpush2.xpose.msra.mxu0 %v168
  %214 = vmatprep.subr.mxu0 0.0
  %215 = vmatpush2.xpose.msra.mxu0 %v165
  %216 = vmatprep.subr.mxu0 0.0
  %217 = vmatpush2.xpose.msra.mxu0 %v162
  %218 = vmatprep.subr.mxu0 0.0
  %219 = vmatpush2.xpose.msra.mxu0 %v159
  %220 = vmatprep.subr.mxu0 0.0
  %221 = vmatpush2.xpose.msra.mxu0 %v156
  %222 = vmatprep.subr.mxu0 0.0
  %223 = vmatpush2.xpose.msra.mxu0 %v153
  %224 = vmatprep.subr.mxu0 0.0
  %225 = vmatpush2.xpose.msra.mxu0 %v150
  %226 = vmatprep.subr.mxu0 0.0
  %227 = vmatpush2.xpose.msra.mxu0 %v147
  %228 = vmatprep.subr.mxu0 0.0
  %229 = vmatpush2.xpose.msra.mxu0 %v144
  %230 = vmatprep.subr.mxu0 0.0
  %231 = vmatpush2.xpose.msra.mxu0 %v141
  %232 = vmatprep.subr.mxu0 0.0
  %233 = vmatpush2.xpose.msra.mxu0 %v138
  %234 = vmatprep.subr.mxu0 0.0
  %235 = vmatpush2.xpose.msra.mxu0 %v135
  %236 = vmatprep.subr.mxu0 0.0
  %237 = vmatpush2.xpose.msra.mxu0 %v132
  %238 = vmatprep.subr.mxu0 0.0
  %239 = vmatpush2.xpose.msra.mxu0 %v129
  %240 = vmatprep.mubr.f32.mxu0 0.0
  %241 = vmatmul.mubr.f32.gmra.mxu0 %v72
  %v242 = vpop.f32.mrf.mxu0
  %v243 = vadd.f32 %v58, %v242
  %v244 = vpop.f32.mrf.mxu0
  %v245 = vadd.f32 %v58, %v244
  %246 = vmatprep.mubr.f32.mxu0 0.0
  %247 = vmatmul.mubr.f32.gmra.mxu0 %v75
  %v248 = vpop.f32.mrf.mxu0
  %v249 = vadd.f32 %v63, %v248
  %v250 = vpop.f32.mrf.mxu0
  %v251 = vadd.f32 %v63, %v250
  %252 = vmatprep.mubr.f32.mxu0 0.0
  %253 = vmatmul.mubr.f32.gmra.mxu0 %v78
  %v254 = vpop.f32.mrf.mxu0
  %v255 = vadd.f32 %v68, %v254
  %v256 = vpop.f32.mrf.mxu0
  %v257 = vadd.f32 %v68, %v256
  %258 = vdwg.mxu0
  %v259 = vmax.f32 %v243, 0.0
  %v260 = vmax.f32 %v245, 0.0
  %v261 = vmax.f32 %v249, 0.0
  %v262 = vmax.f32 %v251, 0.0
  %v263 = vmax.f32 %v255, 0.0
  %v264 = vmax.f32 %v257, 0.0
  %v265 = vld [vmem:[%s3] sm:$0xff]
  %v266 = vld [vmem:[%s3 + $0x8] sm:$0xff]
  %v267 = vld [vmem:[%s3 + $0x10] sm:$0xff]
  %269 = vset.pattern.permute.xlu0 0
  %270 = vperm.xlu0 %269, %v265
  %v271 = vpop.permute.xlu0 %270
  %274 = vset.pattern.permute.xlu0 0
  %275 = vperm.xlu0 %274, %v266
  %v276 = vpop.permute.xlu0 %275
  %279 = vset.pattern.permute.xlu0 0
  %280 = vperm.xlu0 %279, %v267
  %v281 = vpop.permute.xlu0 %280
  %v283 = vmul.f32 %v259, %v271
  %v284 = vmul.f32 %v260, %v271
  %v285 = vmul.f32 %v261, %v276
  %v286 = vmul.f32 %v262, %v276
  %v287 = vmul.f32 %v263, %v281
  %v288 = vmul.f32 %v264, %v281
  %v289 = vadd.f32 %v283, %v285
  %v290 = vadd.f32 %v289, %v287
  %v291 = vrot.slane %v290, 4
  %v292 = vadd.f32 %v290, %v291
  %v293 = vrot.slane %v292, 2
  %v294 = vadd.f32 %v292, %v293
  %v295 = vrot.slane %v294, 1
  %v296 = vadd.f32 %v294, %v295
  %v297 = vadd.f32 %v284, %v286
  %v298 = vadd.f32 %v297, %v288
  %v299 = vrot.slane %v298, 4
  %v300 = vadd.f32 %v298, %v299
  %v301 = vrot.slane %v300, 2
  %v302 = vadd.f32 %v300, %v301
  %v303 = vrot.slane %v302, 1
  %v304 = vadd.f32 %v302, %v303
  %v307 = vcombine.low %v296, %v304
  %v309 = vunpack.c.l.s4 1966171168
  %v310 = vunpack.c.0.s8 %v309
  %v311 = vlaneseq
  %v312 = vshrl.u32 %v311, 7
  %v313 = vsub.s32 %v310, %v312
  %v314 = vrot.slane %v307, %v313
  %v316 = vunpack.c.l.s4 1966171168
  %v317 = vunpack.c.0.s8 %v316
  %v318 = vlaneseq
  %v319 = vshrl.u32 %v318, 7
  %v320 = vsub.s32 %v317, %v319
  %v321 = vrot.slane %v314, %v320
  %v323 = vlaneseq
  %vm324 = vcmp.ge.s32.totalorder %v323, 0
  %vm325 = vcmp.lt.s32.totalorder %v323, 256
  %vm326 = vmand %vm324, %vm325
  %327 = vst.msk [vmem:[%s4] sm:$0x3] %vm326, %v321
  // Predicated region
  $region18: #{mlp_forward.1} parent=0 // pred_check
    _
  $region19: #{mlp_forward.1} parent=0 // pred_check_branch
    %329 = sbr.rel (0) target = $region21
  $region20: #{mlp_forward.1} parent=0 // pred_region
    _
  $region21: #{mlp_forward.1} parent=0 // pred_fallthru
    _
  // Predicated region
  $region22: #{mlp_forward.1} parent=0 // pred_check
    _
  $region23: #{mlp_forward.1} parent=0 // pred_check_branch
    %331 = sbr.rel (0) target = $region25
  $region24: #{mlp_forward.1} parent=0 // pred_region
    _
  $region25: #{mlp_forward.1} parent=0 // pred_fallthru
    _

</llo_original>
